<compile_context>
chip_gen: v7x
topology: tpu7x:2x2x1
jax: 0.10.0
libtpu: 0.0.40
codegen_flags: <defaults>
</compile_context>

<pallas_src>
import functools

import jax
import jax.numpy as jnp
from jax import lax
from jax.experimental import pallas as pl
from jax.experimental.pallas import tpu as pltpu


def _round_up(x, m):
    return ((x + m - 1) // m) * m


def _vmem_cap_bytes():
    # ~75% of physical VMEM: 48 MiB on v7x (64 MiB), 96 MiB on v5e/v6e (128 MiB).
    try:
        cap = int(pltpu.get_tpu_info().vmem_capacity_bytes)
    except Exception:
        cap = 64 << 20  # safe fallback on any generation
    return max((cap * 3) // 4, 16 << 20)


def _gelu_exact(x):
    # BERT exact-erf GELU (matches torch.nn.functional.gelu default).
    return 0.5 * x * (1.0 + lax.erf(x * jnp.float32(0.7071067811865476)))


def _gelu_tanh(x):
    # tanh approximation: transcendental goes to the (otherwise idle) EUP slot.
    c = jnp.float32(0.7978845608028654)
    return 0.5 * x * (1.0 + jnp.tanh(c * (x + jnp.float32(0.044715) * x * x * x)))


def _layer_norm(x, gamma, beta, eps, inv_n):
    # Mask-free biased-variance LayerNorm over the true (unpadded) axis length.
    # Padded columns of x are exactly zero by construction (zero-padded weights
    # and biases, GELU(0)=0), so sum(x) and sum(x*x) already equal the true-axis
    # sums; zeroed gamma/beta keep padded output columns at 0.
    u = jnp.sum(x, axis=-1, keepdims=True) * inv_n
    ex2 = jnp.sum(x * x, axis=-1, keepdims=True) * inv_n
    var = jnp.maximum(ex2 - u * u, 0.0)          # guard cancellation
    xn = (x - u) * lax.rsqrt(var + eps)          # EUP rsqrt, no divide
    return gamma * xn + beta


def mlp_ln_kernel(x_ref, w1_ref, w2_ref, vec_ref, o_ref, *, eps, h_true, gelu_fn):
    vecs = vec_ref[...].astype(jnp.float32)      # (8, h_pad): b1,g1,be1,b2,g2,be2,0,0
    b1, g1, be1 = vecs[0:1], vecs[1:2], vecs[2:3]
    b2, g2, be2 = vecs[3:4], vecs[4:5], vecs[5:6]
    inv_h = jnp.float32(1.0 / h_true)

    x = x_ref[...]                               # already in MXU dtype (wrapper cast)

    # linear1 (MXU, f32 accumulate) + GELU + LayerNorm1 (f32 on VPU/EUP)
    h = jnp.dot(x, w1_ref[...], preferred_element_type=jnp.float32) + b1
    h = gelu_fn(h)
    h = _layer_norm(h, g1, be1, eps, inv_h)

    # linear2 + GELU + LayerNorm2
    h = jnp.dot(h.astype(w2_ref.dtype), w2_ref[...],
                preferred_element_type=jnp.float32) + b2
    h = gelu_fn(h)
    h = _layer_norm(h, g2, be2, eps, inv_h)

    o_ref[...] = h.astype(o_ref.dtype)


def prepare_params(params, *, mxu_dtype=jnp.float32):
    """One-time padding/casting of weights (keep out of the per-call hot path)."""
    w1, b1, g1, be1, w2, b2, g2, be2 = params
    in_size, H = w1.shape
    in_pad = _round_up(in_size, 128)
    h_pad = _round_up(H, 128)
    mxu_dtype = jnp.dtype(mxu_dtype)

    w1p = jnp.pad(w1, ((0, in_pad - in_size), (0, h_pad - H))).astype(mxu_dtype)
    w2p = jnp.pad(w2, ((0, h_pad - H), (0, h_pad - H))).astype(mxu_dtype)

    def pv(v):
        return jnp.pad(v.astype(jnp.float32), ((0, h_pad - H),))

    zeros = jnp.zeros((h_pad,), jnp.float32)
    vecs = jnp.stack([pv(b1), pv(g1), pv(be1), pv(b2), pv(g2), pv(be2),
                      zeros, zeros])             # (8, h_pad), f32

    return dict(w1=w1p, w2=w2p, vecs=vecs, in_size=in_size, hidden_size=H,
                in_pad=in_pad, h_pad=h_pad, mxu_dtype=mxu_dtype)


def _resident_spec(shape, index_map):
    # Constant-index operands: single-buffer them (no VMEM doubling).
    try:
        return pl.BlockSpec(shape, index_map, pipeline_mode=pl.Buffered(1))
    except (TypeError, AttributeError, ValueError):
        return pl.BlockSpec(shape, index_map)


def mlp_with_layer_norm(hidden, prepped, *, eps=1e-12, tm=512, gelu_approx=False):
    """hidden: [B, S, input_size] -> [B, S, hidden_size]."""
    B, S, in_size = hidden.shape
    assert in_size == prepped["in_size"]
    H = prepped["hidden_size"]
    in_pad, h_pad = prepped["in_pad"], prepped["h_pad"]
    mxu_dtype = prepped["mxu_dtype"]

    rows = B * S
    sub = 16 if mxu_dtype == jnp.bfloat16 else 8      # bf16 (16,128) tile rule
    rows_pad = _round_up(rows, sub)

    x2d = hidden.reshape(rows, in_size)
    if mxu_dtype == jnp.bfloat16:
        x2d = x2d.astype(jnp.bfloat16)                # halve streamed-x DMA bytes
    if rows_pad != rows or in_pad != in_size:
        x2d = jnp.pad(x2d, ((0, rows_pad - rows), (0, in_pad - in_size)))

    # Row tile: big by default; shrink for tiny inputs; keep >= 2 grid steps
    # when rows allow so v7x's second TensorCore is used.
    tm_eff = _round_up(min(tm, rows_pad), sub)
    if rows_pad >= 2 * sub:
        tm_eff = min(tm_eff, _round_up(rows_pad // 2, sub))
    grid = pl.cdiv(rows_pad, tm_eff)                  # ragged last tile OK

    # VMEM budget: single-buffered residents + double-buffered streamed tiles
    # + f32 intermediates, clamped to a generation-aware cap.
    xbytes = x2d.dtype.itemsize
    obytes = jnp.dtype(hidden.dtype).itemsize
    wbytes = mxu_dtype.itemsize
    resident = (in_pad * h_pad + h_pad * h_pad) * wbytes + 8 * h_pad * 4
    streamed = 2 * tm_eff * (in_pad * xbytes + h_pad * obytes)
    temps = 4 * tm_eff * max(in_pad, h_pad) * 4
    vmem_limit = int(min(max(resident + streamed + temps + (2 << 20), 16 << 20),
                         _vmem_cap_bytes()))

    full = lambda i: (0, 0)
    gelu_fn = _gelu_tanh if gelu_approx else _gelu_exact

    out2d = pl.pallas_call(
        functools.partial(mlp_ln_kernel, eps=eps, h_true=H, gelu_fn=gelu_fn),
        out_shape=jax.ShapeDtypeStruct((rows_pad, h_pad), hidden.dtype),
        grid_spec=pltpu.PrefetchScalarGridSpec(
            num_scalar_prefetch=0,
            grid=(grid,),
            in_specs=[
                pl.BlockSpec((tm_eff, in_pad), lambda i: (i, 0)),   # streamed x tile
                _resident_spec((in_pad, h_pad), full),              # w1 (resident)
                _resident_spec((h_pad, h_pad), full),               # w2 (resident)
                _resident_spec((8, h_pad), full),                   # packed b/gamma/beta
            ],
            out_specs=pl.BlockSpec((tm_eff, h_pad), lambda i: (i, 0)),
        ),
        compiler_params=pltpu.CompilerParams(
            dimension_semantics=("parallel",),
            vmem_limit_bytes=vmem_limit),
    )(x2d, prepped["w1"], prepped["w2"], prepped["vecs"])

    return out2d[:rows, :H].reshape(B, S, H)


def init_params(key, input_size, hidden_size, dtype=jnp.float32):
    k1, k2, k3, k4 = jax.random.split(key, 4)
    bound1 = 1.0 / (input_size ** 0.5)
    bound2 = 1.0 / (hidden_size ** 0.5)
    w1 = jax.random.uniform(k1, (input_size, hidden_size), dtype, -bound1, bound1)
    b1 = jax.random.uniform(k2, (hidden_size,), dtype, -bound1, bound1)
    w2 = jax.random.uniform(k3, (hidden_size, hidden_size), dtype, -bound2, bound2)
    b2 = jax.random.uniform(k4, (hidden_size,), dtype, -bound2, bound2)
    g1 = jnp.ones((hidden_size,), dtype)
    be1 = jnp.zeros((hidden_size,), dtype)
    g2 = jnp.ones((hidden_size,), dtype)
    be2 = jnp.zeros((hidden_size,), dtype)
    return (w1, b1, g1, be1, w2, b2, g2, be2)


def reference(hidden, params, eps=1e-12):
    def ln(x, gamma, beta):
        u = jnp.mean(x, axis=-1, keepdims=True)
        d = x - u
        s = jnp.mean(d * d, axis=-1, keepdims=True)
        return gamma * (d / jnp.sqrt(s + eps)) + beta

    w1, b1, g1, be1, w2, b2, g2, be2 = params
    h = _gelu_exact(hidden @ w1 + b1)
    h = ln(h, g1, be1)
    h = _gelu_exact(h @ w2 + b2)
    h = ln(h, g2, be2)
    return h


if __name__ == "__main__":
    key = jax.random.PRNGKey(0)
    kx, kp = jax.random.split(key)

    batch, seq, input_size, hidden_size = 2, 8, 32, 32
    hidden = jax.random.normal(kx, (batch, seq, input_size), jnp.float32)
    params = init_params(kp, input_size, hidden_size)

    ref = reference(hidden, params)

    # f32 MXU path: tight vs the f32 reference.
    prepped_f32 = prepare_params(params, mxu_dtype=jnp.float32)
    out = jax.block_until_ready(mlp_with_layer_norm(hidden, prepped_f32))
    assert out.shape == (batch, seq, hidden_size)
    assert jnp.allclose(out, ref, atol=2e-5, rtol=2e-5), "f32 mismatch vs reference"

    # bf16 MXU path (rated-throughput mode on v5e/v6e/v7x): f32 accumulate, looser tol.
    prepped_bf16 = prepare_params(params, mxu_dtype=jnp.bfloat16)
    out_bf16 = jax.block_until_ready(mlp_with_layer_norm(hidden, prepped_bf16))
    assert jnp.allclose(out_bf16, ref, atol=1e-1, rtol=1e-1), "bf16 mismatch vs reference"

    # tanh-approx GELU option (EUP slot) — smoke test; deviates ~1e-3-1e-2 from exact erf.
    out_tanh = jax.block_until_ready(
        mlp_with_layer_norm(hidden, prepped_f32, gelu_approx=True))
    assert jnp.allclose(out_tanh, ref, atol=5e-2, rtol=5e-2), "tanh-GELU mismatch"

    print("KERNEL_OK")
</pallas_src>

<mosaic_0001>
module attributes {stable_mosaic.version = 11 : i64} {
  func.func @mlp_ln_kernel(%arg0: i32, %arg1: memref<8x128xf32, #tpu.memory_space<vmem>>, %arg2: memref<128x128xf32, #tpu.memory_space<vmem>>, %arg3: memref<128x128xf32, #tpu.memory_space<vmem>>, %arg4: memref<8x128xf32, #tpu.memory_space<vmem>>, %arg5: memref<8x128xf32, #tpu.memory_space<vmem>>) attributes {dimension_semantics = [#tpu.dimension_semantics<parallel>], iteration_bounds = array<i64: 2>, scalar_prefetch = 0 : i64, scratch_operands = 0 : i64, tpu.core_type = #tpu.core_type<tc>, window_params = [{transform_indices = @transform_0, window_bounds = array<i64: 8, 128>}, {pipeline_mode = #tpu.pipeline_mode<synchronous>, transform_indices = @transform_1, window_bounds = array<i64: 128, 128>}, {pipeline_mode = #tpu.pipeline_mode<synchronous>, transform_indices = @transform_2, window_bounds = array<i64: 128, 128>}, {pipeline_mode = #tpu.pipeline_mode<synchronous>, transform_indices = @transform_3, window_bounds = array<i64: 8, 128>}, {transform_indices = @transform_4, window_bounds = array<i64: 8, 128>}]} {
    %c0 = arith.constant 0 : index
    %c0_0 = arith.constant 0 : index
    %0 = vector.load %arg4[%c0, %c0_0] : memref<8x128xf32, #tpu.memory_space<vmem>>, vector<8x128xf32>
    %1 = vector.extract_strided_slice %0 {offsets = [0, 0], sizes = [1, 128], strides = [1, 1]} : vector<8x128xf32> to vector<1x128xf32>
    %2 = vector.extract_strided_slice %0 {offsets = [1, 0], sizes = [1, 128], strides = [1, 1]} : vector<8x128xf32> to vector<1x128xf32>
    %3 = vector.extract_strided_slice %0 {offsets = [2, 0], sizes = [1, 128], strides = [1, 1]} : vector<8x128xf32> to vector<1x128xf32>
    %4 = vector.extract_strided_slice %0 {offsets = [3, 0], sizes = [1, 128], strides = [1, 1]} : vector<8x128xf32> to vector<1x128xf32>
    %5 = vector.extract_strided_slice %0 {offsets = [4, 0], sizes = [1, 128], strides = [1, 1]} : vector<8x128xf32> to vector<1x128xf32>
    %6 = vector.extract_strided_slice %0 {offsets = [5, 0], sizes = [1, 128], strides = [1, 1]} : vector<8x128xf32> to vector<1x128xf32>
    %c0_1 = arith.constant 0 : index
    %c0_2 = arith.constant 0 : index
    %7 = vector.load %arg1[%c0_1, %c0_2] : memref<8x128xf32, #tpu.memory_space<vmem>>, vector<8x128xf32>
    %c0_3 = arith.constant 0 : index
    %c0_4 = arith.constant 0 : index
    %8 = vector.load %arg2[%c0_3, %c0_4] : memref<128x128xf32, #tpu.memory_space<vmem>>, vector<128x128xf32>
    %cst = arith.constant dense<0.000000e+00> : vector<8x128xf32>
    %9 = tpu.matmul %7, %8, %cst {dimension_numbers = #tpu.dot_dimension_numbers<[1], [0], [0], [1], [0, 0, 1, 1], [], []>} : vector<8x128xf32>, vector<128x128xf32>, vector<8x128xf32> -> vector<8x128xf32>
    %10 = vector.broadcast %1 : vector<1x128xf32> to vector<8x128xf32>
    %11 = arith.addf %9, %10 : vector<8x128xf32>
    %cst_5 = arith.constant 5.000000e-01 : f32
    %12 = vector.broadcast %cst_5 : f32 to vector<8x128xf32>
    %13 = arith.mulf %12, %11 : vector<8x128xf32>
    %cst_6 = arith.constant 0.707106769 : f32
    %14 = vector.broadcast %cst_6 : f32 to vector<8x128xf32>
    %15 = arith.mulf %11, %14 : vector<8x128xf32>
    %16 = math.erf %15 : vector<8x128xf32>
    %cst_7 = arith.constant 1.000000e+00 : f32
    %17 = vector.broadcast %cst_7 : f32 to vector<8x128xf32>
    %18 = arith.addf %17, %16 : vector<8x128xf32>
    %19 = arith.mulf %13, %18 : vector<8x128xf32>
    %cst_8 = arith.constant dense<0.000000e+00> : vector<8xf32>
    %20 = vector.multi_reduction <add>, %19, %cst_8 [1] : vector<8x128xf32> to vector<8xf32>
    %21 = vector.shape_cast %20 : vector<8xf32> to vector<8x1xf32>
    %cst_9 = arith.constant 3.125000e-02 : f32
    %22 = vector.broadcast %cst_9 : f32 to vector<8x1xf32>
    %23 = arith.mulf %21, %22 : vector<8x1xf32>
    %24 = arith.mulf %19, %19 : vector<8x128xf32>
    %cst_10 = arith.constant dense<0.000000e+00> : vector<8xf32>
    %25 = vector.multi_reduction <add>, %24, %cst_10 [1] : vector<8x128xf32> to vector<8xf32>
    %26 = vector.shape_cast %25 : vector<8xf32> to vector<8x1xf32>
    %cst_11 = arith.constant 3.125000e-02 : f32
    %27 = vector.broadcast %cst_11 : f32 to vector<8x1xf32>
    %28 = arith.mulf %26, %27 : vector<8x1xf32>
    %29 = arith.mulf %23, %23 : vector<8x1xf32>
    %30 = arith.subf %28, %29 : vector<8x1xf32>
    %cst_12 = arith.constant 0.000000e+00 : f32
    %31 = vector.broadcast %cst_12 : f32 to vector<8x1xf32>
    %32 = arith.maximumf %30, %31 : vector<8x1xf32>
    %33 = vector.broadcast %23 : vector<8x1xf32> to vector<8x128xf32>
    %34 = arith.subf %19, %33 : vector<8x128xf32>
    %cst_13 = arith.constant 9.99999996E-13 : f32
    %35 = vector.broadcast %cst_13 : f32 to vector<8x1xf32>
    %36 = arith.addf %32, %35 : vector<8x1xf32>
    %37 = math.rsqrt %36 : vector<8x1xf32>
    %38 = vector.broadcast %37 : vector<8x1xf32> to vector<8x128xf32>
    %39 = arith.mulf %34, %38 : vector<8x128xf32>
    %40 = vector.broadcast %2 : vector<1x128xf32> to vector<8x128xf32>
    %41 = arith.mulf %40, %39 : vector<8x128xf32>
    %42 = vector.broadcast %3 : vector<1x128xf32> to vector<8x128xf32>
    %43 = arith.addf %41, %42 : vector<8x128xf32>
    %c0_14 = arith.constant 0 : index
    %c0_15 = arith.constant 0 : index
    %44 = vector.load %arg3[%c0_14, %c0_15] : memref<128x128xf32, #tpu.memory_space<vmem>>, vector<128x128xf32>
    %cst_16 = arith.constant dense<0.000000e+00> : vector<8x128xf32>
    %45 = tpu.matmul %43, %44, %cst_16 {dimension_numbers = #tpu.dot_dimension_numbers<[1], [0], [0], [1], [0, 0, 1, 1], [], []>} : vector<8x128xf32>, vector<128x128xf32>, vector<8x128xf32> -> vector<8x128xf32>
    %46 = vector.broadcast %4 : vector<1x128xf32> to vector<8x128xf32>
    %47 = arith.addf %45, %46 : vector<8x128xf32>
    %cst_17 = arith.constant 5.000000e-01 : f32
    %48 = vector.broadcast %cst_17 : f32 to vector<8x128xf32>
    %49 = arith.mulf %48, %47 : vector<8x128xf32>
    %cst_18 = arith.constant 0.707106769 : f32
    %50 = vector.broadcast %cst_18 : f32 to vector<8x128xf32>
    %51 = arith.mulf %47, %50 : vector<8x128xf32>
    %52 = math.erf %51 : vector<8x128xf32>
    %cst_19 = arith.constant 1.000000e+00 : f32
    %53 = vector.broadcast %cst_19 : f32 to vector<8x128xf32>
    %54 = arith.addf %53, %52 : vector<8x128xf32>
    %55 = arith.mulf %49, %54 : vector<8x128xf32>
    %cst_20 = arith.constant dense<0.000000e+00> : vector<8xf32>
    %56 = vector.multi_reduction <add>, %55, %cst_20 [1] : vector<8x128xf32> to vector<8xf32>
    %57 = vector.shape_cast %56 : vector<8xf32> to vector<8x1xf32>
    %cst_21 = arith.constant 3.125000e-02 : f32
    %58 = vector.broadcast %cst_21 : f32 to vector<8x1xf32>
    %59 = arith.mulf %57, %58 : vector<8x1xf32>
    %60 = arith.mulf %55, %55 : vector<8x128xf32>
    %cst_22 = arith.constant dense<0.000000e+00> : vector<8xf32>
    %61 = vector.multi_reduction <add>, %60, %cst_22 [1] : vector<8x128xf32> to vector<8xf32>
    %62 = vector.shape_cast %61 : vector<8xf32> to vector<8x1xf32>
    %cst_23 = arith.constant 3.125000e-02 : f32
    %63 = vector.broadcast %cst_23 : f32 to vector<8x1xf32>
    %64 = arith.mulf %62, %63 : vector<8x1xf32>
    %65 = arith.mulf %59, %59 : vector<8x1xf32>
    %66 = arith.subf %64, %65 : vector<8x1xf32>
    %cst_24 = arith.constant 0.000000e+00 : f32
    %67 = vector.broadcast %cst_24 : f32 to vector<8x1xf32>
    %68 = arith.maximumf %66, %67 : vector<8x1xf32>
    %69 = vector.broadcast %59 : vector<8x1xf32> to vector<8x128xf32>
    %70 = arith.subf %55, %69 : vector<8x128xf32>
    %cst_25 = arith.constant 9.99999996E-13 : f32
    %71 = vector.broadcast %cst_25 : f32 to vector<8x1xf32>
    %72 = arith.addf %68, %71 : vector<8x1xf32>
    %73 = math.rsqrt %72 : vector<8x1xf32>
    %74 = vector.broadcast %73 : vector<8x1xf32> to vector<8x128xf32>
    %75 = arith.mulf %70, %74 : vector<8x128xf32>
    %76 = vector.broadcast %5 : vector<1x128xf32> to vector<8x128xf32>
    %77 = arith.mulf %76, %75 : vector<8x128xf32>
    %78 = vector.broadcast %6 : vector<1x128xf32> to vector<8x128xf32>
    %79 = arith.addf %77, %78 : vector<8x128xf32>
    %c0_26 = arith.constant 0 : index
    %c0_27 = arith.constant 0 : index
    %80 = vector.load %arg5[%c0_26, %c0_27] : memref<8x128xf32, #tpu.memory_space<vmem>>, vector<8x128xf32>
    tpu.vector_store %arg5[%c0_26, %c0_27], %79 {strides = array<i32>} : memref<8x128xf32, #tpu.memory_space<vmem>>, vector<8x128xf32>,
    return
  }
  func.func @transform_0(%arg0: i32) -> (i32, i32) {
    %c0_i32 = arith.constant 0 : i32
    %c0_i32_0 = arith.constant 0 : i32
    return %arg0, %c0_i32 : i32, i32
  }
  func.func @transform_1(%arg0: i32) -> (i32, i32) {
    %c0_i32 = arith.constant 0 : i32
    %c0_i32_0 = arith.constant 0 : i32
    %c0_i32_1 = arith.constant 0 : i32
    return %c0_i32, %c0_i32_0 : i32, i32
  }
  func.func @transform_2(%arg0: i32) -> (i32, i32) {
    %c0_i32 = arith.constant 0 : i32
    %c0_i32_0 = arith.constant 0 : i32
    %c0_i32_1 = arith.constant 0 : i32
    return %c0_i32, %c0_i32_0 : i32, i32
  }
  func.func @transform_3(%arg0: i32) -> (i32, i32) {
    %c0_i32 = arith.constant 0 : i32
    %c0_i32_0 = arith.constant 0 : i32
    %c0_i32_1 = arith.constant 0 : i32
    return %c0_i32, %c0_i32_0 : i32, i32
  }
  func.func @transform_4(%arg0: i32) -> (i32, i32) {
    %c0_i32 = arith.constant 0 : i32
    %c0_i32_0 = arith.constant 0 : i32
    return %arg0, %c0_i32 : i32, i32
  }
}

</mosaic_0001>

<llo_original>
// kernel: tpu_custom_call.1
$region0: #{tpu_custom_call.1}
  #allocation0 [shape = 'u32[]', space=smem, size = 0x4, offset = 0x4, fixed_abs, tag = 'smem constant byte address 0x4 - core index']
  #allocation1 [shape = 'u32[144,128]{1,0:T(1,128)}', space=vmem, size = 0x12000, scoped, tag = 'internal scratch']
  %s0 = inlined_call_operand.hbm [shape: f32[16,128], index: 0, kind: input, shape index: {}]
  %s1 = inlined_call_operand.hbm [shape: f32[128,128], index: 1, kind: input, shape index: {}]
  %s2 = inlined_call_operand.hbm [shape: f32[128,128], index: 2, kind: input, shape index: {}]
  %s3 = inlined_call_operand.vmem [shape: f32[8,128], index: 3, kind: input, shape index: {}]
  %s4 = inlined_call_operand.hbm [shape: f32[16,128], index: 4, kind: output, shape index: {}]
  %s5 = sld [smem:[#allocation0]]
  $region61: #{tpu_custom_call.1} parent=0
    _
  %s7 = ssub.s32 1, %s5
  %s8 = scalar_select 0, %s7, %s5
  $region1: #{tpu_custom_call.1} parent=0
    #allocation2 [shape = 'u8[8192]{0}', space=vmem, size = 0x2000, scoped, tag = 'input window, operand 0']
    #allocation3 [shape = 's32[2]{0}', space=sflag, size = 0x8, scoped, tag = 'scoped memory for tpu_custom_call.1']
    #allocation4 [shape = 's32[2]{0}', space=sflag, size = 0x8, scoped, tag = 'scoped memory for tpu_custom_call.1']
    #allocation5 [shape = 'u8[65536]{0}', space=vmem, size = 0x10000, scoped, tag = 'input window, operand 1, single buffered']
    #allocation6 [shape = 's32[1]{0}', space=sflag, size = 0x4, scoped, tag = 'scoped memory for tpu_custom_call.1']
    #allocation7 [shape = 'u8[65536]{0}', space=vmem, size = 0x10000, scoped, tag = 'input window, operand 2, single buffered']
    #allocation8 [shape = 'u8[8192]{0}', space=vmem, size = 0x2000, scoped, tag = 'output window, operand 0']
    %9 = vsyncpa [#allocation3], 0
    %s10 = scalar_lea.sflag [#allocation3], 1
    %11 = vsyncpa %s10, 0
    %12 = vsyncpa [#allocation6], 0
    %13 = vsyncpa [#allocation4], 0
    %s14 = scalar_lea.sflag [#allocation4], 1
    %15 = vsyncpa %s14, 0
    loop: start=0, step=1, limit=4
    $region2: #{tpu_custom_call.1} parent=1 // loop_pre_header
      _
    $region3: #{tpu_custom_call.1} parent=1 // loop_header
      %s17 = sphi 0, %s21
      %p18 = scmp.ge.s32.totalorder %s17, 4
      %s27 = sphi 0, %s29
      %s30 = sphi 0, %s27
      %s31 = sphi 0, %s30
      %s47 = sphi 0, %s31
      %s51 = sphi 0, %s51
      %s53 = sphi 0, %s51
      %s54 = sphi 0, %s53
      %s68 = sphi 0, %s54
      %s72 = sphi 0, %s72
      %s74 = sphi 0, %s72
      %s75 = sphi 0, %s74
      %s89 = sphi 0, %s75
      %s93 = sphi 0, %s93
      %s95 = sphi 0, %s93
      %s96 = sphi 0, %s95
      %s110 = sphi 0, %s96
      %s116 = sphi 0, %s118
      %s119 = sphi 0, %s116
      %s120 = sphi 0, %s119
      %s136 = sphi 0, %s120
    $region4: #{tpu_custom_call.1} parent=1 // loop_header_branch
      %20 = sbr.rel (%p18) target = $region8
    $region5: #{tpu_custom_call.1} parent=1 // loop_body
      %s22 = ssub.s32 %s17, 1
      %s23 = ssub.s32 %s17, 2
      %s24 = sadd.s32 %s17, 1
      %s25 = ssub.s32 %s17, %s24
      %p26 = scmp.eq.s32.totalorder %s25, 0
      %s28 = sadd.s32 %s27, 1
      %s29 = scalar_select %p26, %s27, %s28
      %p32 = pneg %p26
      %p33 = scmp.eq.s32.totalorder %s17, 1
      %p34 = por %p32, %p33
      %p35 = scmp.ne.s32.totalorder %s27, %s30
      %p36 = scmp.eq.s32.totalorder %s17, 0
      %p37 = por %p35, %p36
      %p38 = scmp.ne.s32.totalorder %s27, %s30
      %p39 = scmp.eq.s32.totalorder %s22, 1
      %p40 = por %p38, %p39
      %p41 = scmp.ne.s32.totalorder %s30, %s31
      %p42 = scmp.eq.s32.totalorder %s22, 0
      %p43 = por %p41, %p42
      %p44 = scmp.ne.s32.totalorder %s30, %s31
      %p45 = scmp.eq.s32.totalorder %s23, 1
      %p46 = por %p44, %p45
      %p48 = scmp.ne.s32.totalorder %s31, %s47
      %p49 = scmp.eq.s32.totalorder %s23, 0
      %p50 = por %p48, %p49
      %s52 = sadd.s32 %s51, 1
      %p55 = scmp.eq.s32.totalorder %s17, 1
      %p56 = scmp.ne.s32.totalorder %s51, %s53
      %p57 = scmp.eq.s32.totalorder %s17, 0
      %p58 = por %p56, %p57
      %p59 = scmp.ne.s32.totalorder %s51, %s53
      %p60 = scmp.eq.s32.totalorder %s22, 1
      %p61 = por %p59, %p60
      %p62 = scmp.ne.s32.totalorder %s53, %s54
      %p63 = scmp.eq.s32.totalorder %s22, 0
      %p64 = por %p62, %p63
      %p65 = scmp.ne.s32.totalorder %s53, %s54
      %p66 = scmp.eq.s32.totalorder %s23, 1
      %p67 = por %p65, %p66
      %p69 = scmp.ne.s32.totalorder %s54, %s68
      %p70 = scmp.eq.s32.totalorder %s23, 0
      %p71 = por %p69, %p70
      %s73 = sadd.s32 %s72, 1
      %p76 = scmp.eq.s32.totalorder %s17, 1
      %p77 = scmp.ne.s32.totalorder %s72, %s74
      %p78 = scmp.eq.s32.totalorder %s17, 0
      %p79 = por %p77, %p78
      %p80 = scmp.ne.s32.totalorder %s72, %s74
      %p81 = scmp.eq.s32.totalorder %s22, 1
      %p82 = por %p80, %p81
      %p83 = scmp.ne.s32.totalorder %s74, %s75
      %p84 = scmp.eq.s32.totalorder %s22, 0
      %p85 = por %p83, %p84
      %p86 = scmp.ne.s32.totalorder %s74, %s75
      %p87 = scmp.eq.s32.totalorder %s23, 1
      %p88 = por %p86, %p87
      %p90 = scmp.ne.s32.totalorder %s75, %s89
      %p91 = scmp.eq.s32.totalorder %s23, 0
      %p92 = por %p90, %p91
      %s94 = sadd.s32 %s93, 1
      %p97 = scmp.eq.s32.totalorder %s17, 1
      %p98 = scmp.ne.s32.totalorder %s93, %s95
      %p99 = scmp.eq.s32.totalorder %s17, 0
      %p100 = por %p98, %p99
      %p101 = scmp.ne.s32.totalorder %s93, %s95
      %p102 = scmp.eq.s32.totalorder %s22, 1
      %p103 = por %p101, %p102
      %p104 = scmp.ne.s32.totalorder %s95, %s96
      %p105 = scmp.eq.s32.totalorder %s22, 0
      %p106 = por %p104, %p105
      %p107 = scmp.ne.s32.totalorder %s95, %s96
      %p108 = scmp.eq.s32.totalorder %s23, 1
      %p109 = por %p107, %p108
      %p111 = scmp.ne.s32.totalorder %s96, %s110
      %p112 = scmp.eq.s32.totalorder %s23, 0
      %p113 = por %p111, %p112
      %s114 = ssub.s32 %s17, %s24
      %p115 = scmp.eq.s32.totalorder %s114, 0
      %s117 = sadd.s32 %s116, 1
      %s118 = scalar_select %p115, %s116, %s117
      %p121 = pneg %p115
      %p122 = scmp.eq.s32.totalorder %s17, 1
      %p123 = por %p121, %p122
      %p124 = scmp.ne.s32.totalorder %s116, %s119
      %p125 = scmp.eq.s32.totalorder %s17, 0
      %p126 = por %p124, %p125
      %p127 = scmp.ne.s32.totalorder %s116, %s119
      %p128 = scmp.eq.s32.totalorder %s22, 1
      %p129 = por %p127, %p128
      %p130 = scmp.ne.s32.totalorder %s119, %s120
      %p131 = scmp.eq.s32.totalorder %s22, 0
      %p132 = por %p130, %p131
      %p133 = scmp.ne.s32.totalorder %s119, %s120
      %p134 = scmp.eq.s32.totalorder %s23, 1
      %p135 = por %p133, %p134
      %p137 = scmp.ne.s32.totalorder %s120, %s136
      %p138 = scmp.eq.s32.totalorder %s23, 0
      %p139 = por %p137, %p138
      %p140 = scmp.le.s32.totalorder 1, %s17
      %p141 = scmp.lt.s32.totalorder %s17, 3
      %p142 = pnand %p140, %p141
      %p143 = pneg %p142
      // Predicated region
      $region9: #{tpu_custom_call.1} parent=5 // pred_check
        _
      $region10: #{tpu_custom_call.1} parent=5 // pred_check_branch
        %145 = sbr.rel (%p142) target = $region12
      $region11: #{tpu_custom_call.1} parent=5 // pred_region
        %s146 = ssub.s32 %s17, 1
        // Predicated region
        $region13: #{tpu_custom_call.1} parent=11 // pred_check
          %p147 = pneg %p64
        $region14: #{tpu_custom_call.1} parent=11 // pred_check_branch
          %149 = sbr.rel (%p147) target = $region16
        $region15: #{tpu_custom_call.1} parent=11 // pred_region
          %s151 = ssub.s32 2048, 2048
          %152 = vsyncadd [#allocation6], %s151
          %s153 = sshll.u32 [#allocation5], 4
          %s154 = int_to_ptr.vmem [resolvable:$true] %s153
          %159 = dma.hbm_to_vmem [thread:$0]  %s1, 2048, %s154, [#allocation6], 128, 128, 8
        $region16: #{tpu_custom_call.1} parent=11 // pred_fallthru
          _
        // Predicated region
        $region17: #{tpu_custom_call.1} parent=11 // pred_check
          %p160 = pneg %p85
        $region18: #{tpu_custom_call.1} parent=11 // pred_check_branch
          %162 = sbr.rel (%p160) target = $region20
        $region19: #{tpu_custom_call.1} parent=11 // pred_region
          %s164 = ssub.s32 2048, 2048
          %165 = vsyncadd [#allocation6], %s164
          %s166 = sshll.u32 [#allocation7], 4
          %s167 = int_to_ptr.vmem [resolvable:$true] %s166
          %172 = dma.hbm_to_vmem [thread:$0]  %s2, 2048, %s167, [#allocation6], 128, 128, 8
        $region20: #{tpu_custom_call.1} parent=11 // pred_fallthru
          _
        // Predicated region
        $region21: #{tpu_custom_call.1} parent=11 // pred_check
          %p173 = pneg %p106
        $region22: #{tpu_custom_call.1} parent=11 // pred_check_branch
          %175 = sbr.rel (%p173) target = $region24
        $region23: #{tpu_custom_call.1} parent=11 // pred_region
          _
        $region24: #{tpu_custom_call.1} parent=11 // pred_fallthru
          _
      $region12: #{tpu_custom_call.1} parent=5 // pred_fallthru
        _
      %p176 = scmp.lt.s32.totalorder %s17, 2
      // Predicated region
      $region25: #{tpu_custom_call.1} parent=5 // pred_check
        %p177 = pneg %p176
      $region26: #{tpu_custom_call.1} parent=5 // pred_check_branch
        %179 = sbr.rel (%p177) target = $region28
      $region27: #{tpu_custom_call.1} parent=5 // pred_region
        // Predicated region
        $region29: #{tpu_custom_call.1} parent=27 // pred_check
          %p180 = pneg %p37
        $region30: #{tpu_custom_call.1} parent=27 // pred_check_branch
          %182 = sbr.rel (%p180) target = $region32
        $region31: #{tpu_custom_call.1} parent=27 // pred_region
          %s183 = sand.u32 %s27, 1
          %s184 = scalar_lea.sflag [#allocation3], %s183
          %s185 = sand.u32 %s27, 1
          %s186 = smul.addr %s185, 8
          %s187 = scalar_lea.vmem [#allocation2], %s186
          %s189 = ssub.s32 128, 128
          %190 = vsyncadd %s184, %s189
          %s191 = smul.addr %s17, 128
          %s192 = scalar_lea.hbm %s0, %s191
          %s194 = sshll.u32 %s187, 4
          %s195 = int_to_ptr.vmem [resolvable:$true] %s194
          %197 = dma.hbm_to_vmem [thread:$0]  %s192, 128, %s195, %s184
        $region32: #{tpu_custom_call.1} parent=27 // pred_fallthru
          _
      $region28: #{tpu_custom_call.1} parent=5 // pred_fallthru
        _
      %p198 = scmp.le.s32.totalorder 1, %s17
      %p199 = scmp.lt.s32.totalorder %s17, 3
      %p200 = pnand %p198, %p199
      %p201 = pneg %p200
      // Predicated region
      $region33: #{tpu_custom_call.1} parent=5 // pred_check
        _
      $region34: #{tpu_custom_call.1} parent=5 // pred_check_branch
        %203 = sbr.rel (%p200) target = $region36
      $region35: #{tpu_custom_call.1} parent=5 // pred_region
        %s204 = ssub.s32 %s17, 1
        %s205 = sand.u32 %s30, 1
        %s206 = scalar_lea.sflag [#allocation3], %s205
        %s207 = sand.u32 %s30, 1
        %s208 = smul.addr %s207, 8
        %s209 = scalar_lea.vmem [#allocation2], %s208
        // Predicated region
        $region37: #{tpu_custom_call.1} parent=35 // pred_check
          %p210 = pneg %p43
        $region38: #{tpu_custom_call.1} parent=35 // pred_check_branch
          %212 = sbr.rel (%p210) target = $region40
        $region39: #{tpu_custom_call.1} parent=35 // pred_region
          %213 = dma.done %s206, 128
        $region40: #{tpu_custom_call.1} parent=35 // pred_fallthru
          _
        // Predicated region
        $region41: #{tpu_custom_call.1} parent=35 // pred_check
          %p214 = pneg %p64
        $region42: #{tpu_custom_call.1} parent=35 // pred_check_branch
          %216 = sbr.rel (%p214) target = $region44
        $region43: #{tpu_custom_call.1} parent=35 // pred_region
          %217 = dma.done [#allocation6], 2048
        $region44: #{tpu_custom_call.1} parent=35 // pred_fallthru
          _
        // Predicated region
        $region45: #{tpu_custom_call.1} parent=35 // pred_check
          %p218 = pneg %p85
        $region46: #{tpu_custom_call.1} parent=35 // pred_check_branch
          %220 = sbr.rel (%p218) target = $region48
        $region47: #{tpu_custom_call.1} parent=35 // pred_region
          %221 = dma.done [#allocation6], 2048
        $region48: #{tpu_custom_call.1} parent=35 // pred_fallthru
          _
        %s222 = sand.u32 %s30, 1
        %s223 = scalar_lea.sflag [#allocation3], %s222
        %s224 = sand.u32 %s30, 1
        %s225 = smul.addr %s224, 8
        %s226 = scalar_lea.vmem [#allocation2], %s225
        %p227 = pneg %p43
        %p228 = pneg %p40
        %p229 = pneg %p64
        %p230 = pneg %p61
        %p231 = pneg %p85
        %p232 = pneg %p82
        %p233 = pneg %p106
        %p234 = pneg %p103
        %p235 = pneg %p132
        %p236 = pneg %p129
        %s237 = sand.u32 %s119, 1
        %s238 = scalar_lea.sflag [#allocation4], %s237
        %s239 = sand.u32 %s119, 1
        %s240 = smul.addr %s239, 8
        %s241 = scalar_lea.vmem [#allocation8], %s240
        %v242 = vld [vmem:[%s3] sm:$0xff]
        %v243 = vld [vmem:[%s209] sm:$0xff]
        %v244 = vld [vmem:[#allocation5] sm:$0xff]
        %v245 = vld [vmem:[#allocation5 + $0x8] sm:$0xff]
        %v246 = vld [vmem:[#allocation5 + $0x10] sm:$0xff]
        %v247 = vld [vmem:[#allocation5 + $0x18] sm:$0xff]
        %v248 = vld [vmem:[#allocation5 + $0x20] sm:$0xff]
        %v249 = vld [vmem:[#allocation5 + $0x28] sm:$0xff]
        %v250 = vld [vmem:[#allocation5 + $0x30] sm:$0xff]
        %v251 = vld [vmem:[#allocation5 + $0x38] sm:$0xff]
        %v252 = vld [vmem:[#allocation5 + $0x40] sm:$0xff]
        %v253 = vld [vmem:[#allocation5 + $0x48] sm:$0xff]
        %v254 = vld [vmem:[#allocation5 + $0x50] sm:$0xff]
        %v255 = vld [vmem:[#allocation5 + $0x58] sm:$0xff]
        %v256 = vld [vmem:[#allocation5 + $0x60] sm:$0xff]
        %v257 = vld [vmem:[#allocation5 + $0x68] sm:$0xff]
        %v258 = vld [vmem:[#allocation5 + $0x70] sm:$0xff]
        %v259 = vld [vmem:[#allocation5 + $0x78] sm:$0xff]
        %v260 = vlaneseq
        %v261 = vshrl.u32 %v260, 7
        %v262 = vsub.s32 0, %v261
        %v263 = vrot.slane %v242, %v262
        %264 = vmatprep.subr.mxu0 0.0
        %265 = vmatpush1.msra.mxu0 %v244
        %266 = vmatprep.subr.mxu0 0.0
        %267 = vmatpush1.msra.mxu0 %v245
        %268 = vmatprep.subr.mxu0 0.0
        %269 = vmatpush1.msra.mxu0 %v246
        %270 = vmatprep.subr.mxu0 0.0
        %271 = vmatpush1.msra.mxu0 %v247
        %272 = vmatprep.subr.mxu0 0.0
        %273 = vmatpush1.msra.mxu0 %v248
        %274 = vmatprep.subr.mxu0 0.0
        %275 = vmatpush1.msra.mxu0 %v249
        %276 = vmatprep.subr.mxu0 0.0
        %277 = vmatpush1.msra.mxu0 %v250
        %278 = vmatprep.subr.mxu0 0.0
        %279 = vmatpush1.msra.mxu0 %v251
        %280 = vmatprep.subr.mxu0 0.0
        %281 = vmatpush1.msra.mxu0 %v252
        %282 = vmatprep.subr.mxu0 0.0
        %283 = vmatpush1.msra.mxu0 %v253
        %284 = vmatprep.subr.mxu0 0.0
        %285 = vmatpush1.msra.mxu0 %v254
        %286 = vmatprep.subr.mxu0 0.0
        %287 = vmatpush1.msra.mxu0 %v255
        %288 = vmatprep.subr.mxu0 0.0
        %289 = vmatpush1.msra.mxu0 %v256
        %290 = vmatprep.subr.mxu0 0.0
        %291 = vmatpush1.msra.mxu0 %v257
        %292 = vmatprep.subr.mxu0 0.0
        %293 = vmatpush1.msra.mxu0 %v258
        %294 = vmatprep.subr.mxu0 0.0
        %295 = vmatpush1.msra.mxu0 %v259
        %296 = vmatprep.subr.mxu0 0.0
        %297 = vmatpush1.msra.mxu0 0.0
        %298 = vmatprep.subr.mxu0 0.0
        %299 = vmatpush1.msra.mxu0 0.0
        %300 = vmatprep.subr.mxu0 0.0
        %301 = vmatpush1.msra.mxu0 0.0
        %302 = vmatprep.subr.mxu0 0.0
        %303 = vmatpush1.msra.mxu0 0.0
        %304 = vmatprep.subr.mxu0 0.0
        %305 = vmatpush1.msra.mxu0 0.0
        %306 = vmatprep.subr.mxu0 0.0
        %307 = vmatpush1.msra.mxu0 0.0
        %308 = vmatprep.subr.mxu0 0.0
        %309 = vmatpush1.msra.mxu0 0.0
        %310 = vmatprep.subr.mxu0 0.0
        %311 = vmatpush1.msra.mxu0 0.0
        %312 = vmatprep.subr.mxu0 0.0
        %313 = vmatpush1.msra.mxu0 0.0
        %314 = vmatprep.subr.mxu0 0.0
        %315 = vmatpush1.msra.mxu0 0.0
        %316 = vmatprep.subr.mxu0 0.0
        %317 = vmatpush1.msra.mxu0 0.0
        %318 = vmatprep.subr.mxu0 0.0
        %319 = vmatpush1.msra.mxu0 0.0
        %320 = vmatprep.subr.mxu0 0.0
        %321 = vmatpush1.msra.mxu0 0.0
        %322 = vmatprep.subr.mxu0 0.0
        %323 = vmatpush1.msra.mxu0 0.0
        %324 = vmatprep.subr.mxu0 0.0
        %325 = vmatpush1.msra.mxu0 0.0
        %326 = vmatprep.subr.mxu0 0.0
        %327 = vmatpush1.msra.mxu0 0.0
        %328 = vmatprep.mubr.f32.mxu0 0.0
        %329 = vmatmul.mubr.f32.gmra.mrb[0].mxu0 %v243
        %v330 = vpop.f32.mrb[0].mxu0
        %v331 = vadd.f32 %v263, %v330
        %v332 = vpop.f32.mrb[0].mxu0
        %333 = vdwg.mxu0
        %v334 = vmul.f32 %v331, 0.5
        %v335 = vmul.f32 %v331, 0.70710677
        %v336 = verf.f32.pop %v335
        %v337 = vadd.f32 %v336, 1.0
        %v338 = vmul.f32 %v334, %v337
        %339 = vadd.xlane.f32.xlu0 %v338
        %v340 = vpop.xlane.xlu0 %339
        %v341 = vmul.f32 %v340, 0.03125
        %v342 = vmul.f32 %v338, %v338
        %343 = vadd.xlane.f32.xlu0 %v342
        %v344 = vpop.xlane.xlu0 %343
        %v345 = vmul.f32 %v344, 0.03125
        %v346 = vmul.f32 %v341, %v341
        %v347 = vsub.f32 %v345, %v346
        %v348 = vmax.f32 %v347, 0.0
        %v349 = vsub.f32 %v338, %v341
        %v350 = vadd.f32 %v348, 1e-12
        %v351 = vrsqrt.pop %v350
        %v352 = vmul.f32 %v349, %v351
        %v353 = vlaneseq
        %v354 = vshrl.u32 %v353, 7
        %v355 = vsub.s32 1, %v354
        %v356 = vrot.slane %v242, %v355
        %v357 = vmul.f32 %v356, %v352
        %v358 = vlaneseq
        %v359 = vshrl.u32 %v358, 7
        %v360 = vsub.s32 2, %v359
        %v361 = vrot.slane %v242, %v360
        %v362 = vadd.f32 %v357, %v361
        %v363 = vld [vmem:[#allocation7] sm:$0xff]
        %v364 = vld [vmem:[#allocation7 + $0x8] sm:$0xff]
        %v365 = vld [vmem:[#allocation7 + $0x10] sm:$0xff]
        %v366 = vld [vmem:[#allocation7 + $0x18] sm:$0xff]
        %v367 = vld [vmem:[#allocation7 + $0x20] sm:$0xff]
        %v368 = vld [vmem:[#allocation7 + $0x28] sm:$0xff]
        %v369 = vld [vmem:[#allocation7 + $0x30] sm:$0xff]
        %v370 = vld [vmem:[#allocation7 + $0x38] sm:$0xff]
        %v371 = vld [vmem:[#allocation7 + $0x40] sm:$0xff]
        %v372 = vld [vmem:[#allocation7 + $0x48] sm:$0xff]
        %v373 = vld [vmem:[#allocation7 + $0x50] sm:$0xff]
        %v374 = vld [vmem:[#allocation7 + $0x58] sm:$0xff]
        %v375 = vld [vmem:[#allocation7 + $0x60] sm:$0xff]
        %v376 = vld [vmem:[#allocation7 + $0x68] sm:$0xff]
        %v377 = vld [vmem:[#allocation7 + $0x70] sm:$0xff]
        %v378 = vld [vmem:[#allocation7 + $0x78] sm:$0xff]
        %v379 = vlaneseq
        %v380 = vshrl.u32 %v379, 7
        %v381 = vsub.s32 3, %v380
        %v382 = vrot.slane %v242, %v381
        %383 = vmatprep.subr.mxu0 0.0
        %384 = vmatpush1.msra.mxu0 %v363
        %385 = vmatprep.subr.mxu0 0.0
        %386 = vmatpush1.msra.mxu0 %v364
        %387 = vmatprep.subr.mxu0 0.0
        %388 = vmatpush1.msra.mxu0 %v365
        %389 = vmatprep.subr.mxu0 0.0
        %390 = vmatpush1.msra.mxu0 %v366
        %391 = vmatprep.subr.mxu0 0.0
        %392 = vmatpush1.msra.mxu0 %v367
        %393 = vmatprep.subr.mxu0 0.0
        %394 = vmatpush1.msra.mxu0 %v368
        %395 = vmatprep.subr.mxu0 0.0
        %396 = vmatpush1.msra.mxu0 %v369
        %397 = vmatprep.subr.mxu0 0.0
        %398 = vmatpush1.msra.mxu0 %v370
        %399 = vmatprep.subr.mxu0 0.0
        %400 = vmatpush1.msra.mxu0 %v371
        %401 = vmatprep.subr.mxu0 0.0
        %402 = vmatpush1.msra.mxu0 %v372
        %403 = vmatprep.subr.mxu0 0.0
        %404 = vmatpush1.msra.mxu0 %v373
        %405 = vmatprep.subr.mxu0 0.0
        %406 = vmatpush1.msra.mxu0 %v374
        %407 = vmatprep.subr.mxu0 0.0
        %408 = vmatpush1.msra.mxu0 %v375
        %409 = vmatprep.subr.mxu0 0.0
        %410 = vmatpush1.msra.mxu0 %v376
        %411 = vmatprep.subr.mxu0 0.0
        %412 = vmatpush1.msra.mxu0 %v377
        %413 = vmatprep.subr.mxu0 0.0
        %414 = vmatpush1.msra.mxu0 %v378
        %415 = vmatprep.subr.mxu0 0.0
        %416 = vmatpush1.msra.mxu0 0.0
        %417 = vmatprep.subr.mxu0 0.0
        %418 = vmatpush1.msra.mxu0 0.0
        %419 = vmatprep.subr.mxu0 0.0
        %420 = vmatpush1.msra.mxu0 0.0
        %421 = vmatprep.subr.mxu0 0.0
        %422 = vmatpush1.msra.mxu0 0.0
        %423 = vmatprep.subr.mxu0 0.0
        %424 = vmatpush1.msra.mxu0 0.0
        %425 = vmatprep.subr.mxu0 0.0
        %426 = vmatpush1.msra.mxu0 0.0
        %427 = vmatprep.subr.mxu0 0.0
        %428 = vmatpush1.msra.mxu0 0.0
        %429 = vmatprep.subr.mxu0 0.0
        %430 = vmatpush1.msra.mxu0 0.0
        %431 = vmatprep.subr.mxu0 0.0
        %432 = vmatpush1.msra.mxu0 0.0
        %433 = vmatprep.subr.mxu0 0.0
        %434 = vmatpush1.msra.mxu0 0.0
        %435 = vmatprep.subr.mxu0 0.0
        %436 = vmatpush1.msra.mxu0 0.0
        %437 = vmatprep.subr.mxu0 0.0
        %438 = vmatpush1.msra.mxu0 0.0
        %439 = vmatprep.subr.mxu0 0.0
        %440 = vmatpush1.msra.mxu0 0.0
        %441 = vmatprep.subr.mxu0 0.0
        %442 = vmatpush1.msra.mxu0 0.0
        %443 = vmatprep.subr.mxu0 0.0
        %444 = vmatpush1.msra.mxu0 0.0
        %445 = vmatprep.subr.mxu0 0.0
        %446 = vmatpush1.msra.mxu0 0.0
        %447 = vmatprep.mubr.f32.mxu0 0.0
        %448 = vmatmul.mubr.f32.gmra.mrb[0].mxu0 %v362
        %v449 = vpop.f32.mrb[0].mxu0
        %v450 = vadd.f32 %v382, %v449
        %v451 = vpop.f32.mrb[0].mxu0
        %452 = vdwg.mxu0
        %v453 = vmul.f32 %v450, 0.5
        %v454 = vmul.f32 %v450, 0.70710677
        %v455 = verf.f32.pop %v454
        %v456 = vadd.f32 %v455, 1.0
        %v457 = vmul.f32 %v453, %v456
        %458 = vadd.xlane.f32.xlu0 %v457
        %v459 = vpop.xlane.xlu0 %458
        %v460 = vmul.f32 %v459, 0.03125
        %v461 = vmul.f32 %v457, %v457
        %462 = vadd.xlane.f32.xlu0 %v461
        %v463 = vpop.xlane.xlu0 %462
        %v464 = vmul.f32 %v463, 0.03125
        %v465 = vmul.f32 %v460, %v460
        %v466 = vsub.f32 %v464, %v465
        %v467 = vmax.f32 %v466, 0.0
        %v468 = vsub.f32 %v457, %v460
        %v469 = vadd.f32 %v467, 1e-12
        %v470 = vrsqrt.pop %v469
        %v471 = vmul.f32 %v468, %v470
        %v472 = vlaneseq
        %v473 = vshrl.u32 %v472, 7
        %v474 = vsub.s32 4, %v473
        %v475 = vrot.slane %v242, %v474
        %v476 = vmul.f32 %v475, %v471
        %v477 = vlaneseq
        %v478 = vshrl.u32 %v477, 7
        %v479 = vsub.s32 5, %v478
        %v480 = vrot.slane %v242, %v479
        %v481 = vadd.f32 %v476, %v480
        %482 = vst [vmem:[%s241] sm:$0xff] %v481
        %s483 = sand.u32 %s119, 1
        %s484 = scalar_lea.sflag [#allocation4], %s483
        %s485 = sand.u32 %s119, 1
        %s486 = smul.addr %s485, 8
        %s487 = scalar_lea.vmem [#allocation8], %s486
        // Predicated region
        $region49: #{tpu_custom_call.1} parent=35 // pred_check
          %p488 = pneg %p129
        $region50: #{tpu_custom_call.1} parent=35 // pred_check_branch
          %490 = sbr.rel (%p488) target = $region52
        $region51: #{tpu_custom_call.1} parent=35 // pred_region
          %s492 = ssub.s32 128, 128
          %493 = vsyncadd %s484, %s492
          %s494 = smul.addr %s22, 128
          %s495 = scalar_lea.hbm %s4, %s494
          %s497 = sshll.u32 %s487, 4
          %s498 = int_to_ptr.vmem [resolvable:$true] %s497
          %500 = dma.vmem_to_hbm [thread:$0]  %s498, 128, %s495, %s484
        $region52: #{tpu_custom_call.1} parent=35 // pred_fallthru
          _
      $region36: #{tpu_custom_call.1} parent=5 // pred_fallthru
        _
      %p501 = scmp.le.s32.totalorder 2, %s17
      // Predicated region
      $region53: #{tpu_custom_call.1} parent=5 // pred_check
        %p502 = pneg %p501
      $region54: #{tpu_custom_call.1} parent=5 // pred_check_branch
        %504 = sbr.rel (%p502) target = $region56
      $region55: #{tpu_custom_call.1} parent=5 // pred_region
        %s505 = ssub.s32 %s17, 2
        // Predicated region
        $region57: #{tpu_custom_call.1} parent=55 // pred_check
          %p506 = pneg %p135
        $region58: #{tpu_custom_call.1} parent=55 // pred_check_branch
          %508 = sbr.rel (%p506) target = $region60
        $region59: #{tpu_custom_call.1} parent=55 // pred_region
          %s509 = sand.u32 %s120, 1
          %s510 = scalar_lea.sflag [#allocation4], %s509
          %s511 = sand.u32 %s120, 1
          %s512 = smul.addr %s511, 8
          %s513 = scalar_lea.vmem [#allocation8], %s512
          %514 = dma.done %s510, 128
        $region60: #{tpu_custom_call.1} parent=55 // pred_fallthru
          _
      $region56: #{tpu_custom_call.1} parent=5 // pred_fallthru
        _
    $region6: #{tpu_custom_call.1} parent=1 // loop_footer
      %s21 = sadd.s32 1, %s17
    $region7: #{tpu_custom_call.1} parent=1 // loop_footer_branch
      %16 = sbr.rel target = $region3
    $region8: #{tpu_custom_call.1} parent=1 // loop_exit
      _
    %515 = vsyncpa [#allocation3], 1
    %s516 = scalar_lea.sflag [#allocation3], 1
    %517 = vsyncpa %s516, 1
    %518 = vsyncpa [#allocation6], 1
    %519 = vsyncpa [#allocation4], 1
    %s520 = scalar_lea.sflag [#allocation4], 1
    %521 = vsyncpa %s520, 1

</llo_original>
